<compile_context>
chip_gen: v6e
topology: v6e:2x2x1
jax: 0.10.0
libtpu: 0.0.40
codegen_flags: <defaults>
</compile_context>

<pallas_src>
import functools

import jax
import jax.numpy as jnp
from jax.experimental import pallas as pl
from jax.experimental.pallas import tpu as pltpu


def _gaussian_kernel(x_ref, w_ref, b_ref, eps_ref, out_ref, *, out_pad):
    x = x_ref[...]

    # Fused heads: one (TB, in) @ (in, 2*out_pad) MXU matmul, f32 accumulation.
    pre = jnp.dot(x, w_ref[...], preferred_element_type=jnp.float32) + b_ref[...]

    mu = pre[:, :out_pad]            # mu head (static, 128-aligned slice)
    s = pre[:, out_pad:]             # sigma-head pre-activation

    # Numerically stable softplus: max(x, 0) + log1p(exp(-|x|))  (exp/log on EUP slot)
    std = jnp.maximum(s, 0.0) + jnp.log1p(jnp.exp(-jnp.abs(s)))

    # Reparameterization: z = mu + std * eps
    z = mu + std * eps_ref[...]

    # Single lane-dense store of the packed [TB, 3*out_pad] slab.
    out_ref[...] = jnp.concatenate([mu, std, z], axis=-1).astype(out_ref.dtype)


def _round_up(n, m):
    return ((n + m - 1) // m) * m


@functools.partial(jax.jit, static_argnames=("block_b",))
def gaussian_nn_forward(x, w_mu, b_mu, w_sig, b_sig, eps, *, block_b=None):
    """x: [B, in_sz]; w_*: [in_sz, out_sz] (pre-transposed); b_*: [out_sz]; eps: [B, out_sz]."""
    B, in_sz = x.shape
    out_sz = w_mu.shape[1]
    out_pad = pl.cdiv(out_sz, 128) * 128          # lane-dense width per head

    # --- fused, lane-padded weights / biases (stay resident in VMEM) ---------
    w = jnp.zeros((in_sz, 2 * out_pad), jnp.float32)
    w = w.at[:, :out_sz].set(w_mu.astype(jnp.float32))
    w = w.at[:, out_pad:out_pad + out_sz].set(w_sig.astype(jnp.float32))
    b = jnp.zeros((1, 2 * out_pad), jnp.float32)
    b = b.at[:, :out_sz].set(b_mu.astype(jnp.float32))
    b = b.at[:, out_pad:out_pad + out_sz].set(b_sig.astype(jnp.float32))

    # --- batch tile sized against a v7x-safe VMEM budget ---------------------
    if block_b is None:
        budget = 36 * 1024 * 1024                 # leave headroom under 48 MiB scoped limit
        per_row = 4 * (in_sz + out_pad + 3 * out_pad) * 2   # f32, double-buffered tiles
        block_b = max(8, (min(2048, budget // per_row) // 8) * 8)
    tb = min(block_b, _round_up(B, 8))
    tb = max(8, (tb // 8) * 8)
    b_pad = pl.cdiv(B, tb) * tb

    # --- pad batch / lane dims on the wrapper side ----------------------------
    x_p = x.astype(jnp.float32)
    if b_pad != B:
        x_p = jnp.pad(x_p, ((0, b_pad - B), (0, 0)))
    eps_p = jnp.zeros((b_pad, out_pad), jnp.float32)
    eps_p = eps_p.at[:B, :out_sz].set(eps.astype(jnp.float32))

    grid = (b_pad // tb,)

    out = pl.pallas_call(
        functools.partial(_gaussian_kernel, out_pad=out_pad),
        out_shape=jax.ShapeDtypeStruct((b_pad, 3 * out_pad), jnp.float32),
        grid=grid,
        in_specs=[
            pl.BlockSpec((tb, in_sz), lambda i: (i, 0)),            # X tile (pipelined)
            pl.BlockSpec((in_sz, 2 * out_pad), lambda i: (0, 0)),   # fused weights (resident)
            pl.BlockSpec((1, 2 * out_pad), lambda i: (0, 0)),       # fused bias (resident)
            pl.BlockSpec((tb, out_pad), lambda i: (i, 0)),          # eps tile (pipelined)
        ],
        out_specs=pl.BlockSpec((tb, 3 * out_pad), lambda i: (i, 0)),
        compiler_params=pltpu.CompilerParams(
            dimension_semantics=("parallel",),          # megacore on v7x
            vmem_limit_bytes=48 * 1024 * 1024,          # fits 64 MiB physical on v7x
        ),
    )(x_p, w, b, eps_p)

    mu = out[:B, :out_sz]
    std = out[:B, out_pad:out_pad + out_sz]
    z = out[:B, 2 * out_pad:2 * out_pad + out_sz]
    return {"mu": mu, "std": std, "z": z}


def _ref_forward(x, w_mu, b_mu, w_sig, b_sig, eps):
    mu = x @ w_mu + b_mu
    std = jax.nn.softplus(x @ w_sig + b_sig)
    return {"mu": mu, "std": std, "z": mu + std * eps}


if __name__ == "__main__":
    B, in_sz, out_sz = 256, 32, 16

    key = jax.random.PRNGKey(0)
    kx, kwm, kbm, kws, kbs, keps = jax.random.split(key, 6)

    # Deterministic parameter init, matching nn.Linear's U(-1/sqrt(in), 1/sqrt(in))
    bound = 1.0 / jnp.sqrt(jnp.float32(in_sz))
    x = jax.random.normal(kx, (B, in_sz), dtype=jnp.float32)
    w_mu = jax.random.uniform(kwm, (in_sz, out_sz), jnp.float32, -bound, bound)
    b_mu = jax.random.uniform(kbm, (out_sz,), jnp.float32, -bound, bound)
    w_sig = jax.random.uniform(kws, (in_sz, out_sz), jnp.float32, -bound, bound)
    b_sig = jax.random.uniform(kbs, (out_sz,), jnp.float32, -bound, bound)
    eps = jax.random.normal(keps, (B, out_sz), dtype=jnp.float32)

    # block_b=64 forces a multi-step grid (4 tiles) even at this small demo size
    # so the pipelined path is exercised; in production leave block_b=None.
    out = gaussian_nn_forward(x, w_mu, b_mu, w_sig, b_sig, eps, block_b=64)
    jax.block_until_ready(out)

    ref = _ref_forward(x, w_mu, b_mu, w_sig, b_sig, eps)
    for k in ("mu", "std", "z"):
        assert out[k].shape == (B, out_sz), k
        assert jnp.allclose(out[k], ref[k], atol=1e-5, rtol=1e-5), k

    print("KERNEL_OK")
</pallas_src>

<mosaic_0001>
module attributes {stable_mosaic.version = 11 : i64} {
  func.func @_gaussian_kernel(%arg0: i32, %arg1: memref<64x32xf32, #tpu.memory_space<vmem>>, %arg2: memref<32x256xf32, #tpu.memory_space<vmem>>, %arg3: memref<1x256xf32, #tpu.memory_space<vmem>>, %arg4: memref<64x128xf32, #tpu.memory_space<vmem>>, %arg5: memref<64x384xf32, #tpu.memory_space<vmem>>) attributes {dimension_semantics = [#tpu.dimension_semantics<parallel>], iteration_bounds = array<i64: 4>, scalar_prefetch = 0 : i64, scratch_operands = 0 : i64, tpu.core_type = #tpu.core_type<tc>, window_params = [{transform_indices = @transform_0, window_bounds = array<i64: 64, 32>}, {pipeline_mode = #tpu.pipeline_mode<synchronous>, transform_indices = @transform_1, window_bounds = array<i64: 32, 256>}, {pipeline_mode = #tpu.pipeline_mode<synchronous>, transform_indices = @transform_2, window_bounds = array<i64: 1, 256>}, {transform_indices = @transform_3, window_bounds = array<i64: 64, 128>}, {transform_indices = @transform_4, window_bounds = array<i64: 64, 384>}]} {
    %c0 = arith.constant 0 : index
    %c0_0 = arith.constant 0 : index
    %0 = vector.load %arg1[%c0, %c0_0] : memref<64x32xf32, #tpu.memory_space<vmem>>, vector<64x32xf32>
    %c0_1 = arith.constant 0 : index
    %c0_2 = arith.constant 0 : index
    %1 = vector.load %arg2[%c0_1, %c0_2] : memref<32x256xf32, #tpu.memory_space<vmem>>, vector<32x256xf32>
    %cst = arith.constant dense<0.000000e+00> : vector<64x256xf32>
    %2 = tpu.matmul %0, %1, %cst {dimension_numbers = #tpu.dot_dimension_numbers<[1], [0], [0], [1], [0, 0, 1, 1], [], []>} : vector<64x32xf32>, vector<32x256xf32>, vector<64x256xf32> -> vector<64x256xf32>
    %c0_3 = arith.constant 0 : index
    %c0_4 = arith.constant 0 : index
    %3 = vector.load %arg3[%c0_3, %c0_4] : memref<1x256xf32, #tpu.memory_space<vmem>>, vector<1x256xf32>
    %4 = vector.broadcast %3 : vector<1x256xf32> to vector<64x256xf32>
    %5 = arith.addf %2, %4 : vector<64x256xf32>
    %6 = vector.extract_strided_slice %5 {offsets = [0, 0], sizes = [64, 128], strides = [1, 1]} : vector<64x256xf32> to vector<64x128xf32>
    %7 = vector.extract_strided_slice %5 {offsets = [0, 128], sizes = [64, 128], strides = [1, 1]} : vector<64x256xf32> to vector<64x128xf32>
    %cst_5 = arith.constant 0.000000e+00 : f32
    %8 = vector.broadcast %cst_5 : f32 to vector<64x128xf32>
    %9 = arith.maximumf %7, %8 : vector<64x128xf32>
    %10 = math.absf %7 : vector<64x128xf32>
    %cst_6 = arith.constant 0.000000e+00 : f32
    %11 = vector.broadcast %cst_6 : f32 to vector<64x128xf32>
    %12 = arith.subf %11, %10 : vector<64x128xf32>
    %13 = math.exp %12 : vector<64x128xf32>
    %14 = math.log1p %13 : vector<64x128xf32>
    %15 = arith.addf %9, %14 : vector<64x128xf32>
    %c0_7 = arith.constant 0 : index
    %c0_8 = arith.constant 0 : index
    %16 = vector.load %arg4[%c0_7, %c0_8] : memref<64x128xf32, #tpu.memory_space<vmem>>, vector<64x128xf32>
    %17 = arith.mulf %15, %16 : vector<64x128xf32>
    %18 = arith.addf %6, %17 : vector<64x128xf32>
    %19 = tpu.concatenate %6, %15, %18 in 1 : vector<64x128xf32>, vector<64x128xf32>, vector<64x128xf32> -> vector<64x384xf32>
    %c0_9 = arith.constant 0 : index
    %c0_10 = arith.constant 0 : index
    %20 = vector.load %arg5[%c0_9, %c0_10] : memref<64x384xf32, #tpu.memory_space<vmem>>, vector<64x384xf32>
    tpu.vector_store %arg5[%c0_9, %c0_10], %19 {strides = array<i32>} : memref<64x384xf32, #tpu.memory_space<vmem>>, vector<64x384xf32>,
    return
  }
  func.func @transform_0(%arg0: i32) -> (i32, i32) {
    %c0_i32 = arith.constant 0 : i32
    %c0_i32_0 = arith.constant 0 : i32
    return %arg0, %c0_i32 : i32, i32
  }
  func.func @transform_1(%arg0: i32) -> (i32, i32) {
    %c0_i32 = arith.constant 0 : i32
    %c0_i32_0 = arith.constant 0 : i32
    %c0_i32_1 = arith.constant 0 : i32
    return %c0_i32, %c0_i32_0 : i32, i32
  }
  func.func @transform_2(%arg0: i32) -> (i32, i32) {
    %c0_i32 = arith.constant 0 : i32
    %c0_i32_0 = arith.constant 0 : i32
    %c0_i32_1 = arith.constant 0 : i32
    return %c0_i32, %c0_i32_0 : i32, i32
  }
  func.func @transform_3(%arg0: i32) -> (i32, i32) {
    %c0_i32 = arith.constant 0 : i32
    %c0_i32_0 = arith.constant 0 : i32
    return %arg0, %c0_i32 : i32, i32
  }
  func.func @transform_4(%arg0: i32) -> (i32, i32) {
    %c0_i32 = arith.constant 0 : i32
    %c0_i32_0 = arith.constant 0 : i32
    return %arg0, %c0_i32 : i32, i32
  }
}

</mosaic_0001>

<llo_original>
// kernel: gaussian_nn_forward.1
$region0: #{gaussian_nn_forward.1}
  #allocation0 [shape = 'u32[]', space=smem, size = 0x4, offset = 0x4, fixed_abs, tag = 'smem constant byte address 0x4 - core index']
  #allocation1 [shape = 'u32[144,128]{1,0:T(1,128)}', space=vmem, size = 0x12000, scoped, tag = 'internal scratch']
  %s0 = inlined_call_operand.vmem [shape: f32[256,32], index: 0, kind: input, shape index: {}]
  %s1 = inlined_call_operand.vmem [shape: f32[32,256], index: 1, kind: input, shape index: {}]
  %s2 = inlined_call_operand.vmem [shape: f32[1,256], index: 2, kind: input, shape index: {}]
  %s3 = inlined_call_operand.vmem [shape: f32[256,128], index: 3, kind: input, shape index: {}]
  %s4 = inlined_call_operand.vmem [shape: f32[256,384], index: 4, kind: output, shape index: {}]
  %s5 = sld [smem:[#allocation0]]
  $region49: #{gaussian_nn_forward.1} parent=0
    _
  %s7 = ssub.s32 1, %s5
  %s8 = scalar_select 0, %s7, %s5
  loop: start=0, step=1, limit=6
  $region2: #{gaussian_nn_forward.1} parent=0 // loop_pre_header
    _
  $region3: #{gaussian_nn_forward.1} parent=0 // loop_header
    %s10 = sphi 0, %s14
    %p11 = scmp.ge.s32.totalorder %s10, 6
    %s20 = sphi 0, %s22
    %s23 = sphi 0, %s20
    %s24 = sphi 0, %s23
    %s40 = sphi 0, %s24
    %s44 = sphi 0, %s44
    %s46 = sphi 0, %s44
    %s47 = sphi 0, %s46
    %s61 = sphi 0, %s47
    %s65 = sphi 0, %s65
    %s67 = sphi 0, %s65
    %s68 = sphi 0, %s67
    %s82 = sphi 0, %s68
    %s88 = sphi 0, %s90
    %s91 = sphi 0, %s88
    %s92 = sphi 0, %s91
    %s108 = sphi 0, %s92
    %s114 = sphi 0, %s116
    %s117 = sphi 0, %s114
    %s118 = sphi 0, %s117
    %s134 = sphi 0, %s118
  $region4: #{gaussian_nn_forward.1} parent=0 // loop_header_branch
    %13 = sbr.rel (%p11) target = $region8
  $region5: #{gaussian_nn_forward.1} parent=0 // loop_body
    %s15 = ssub.s32 %s10, 1
    %s16 = ssub.s32 %s10, 2
    %s17 = sadd.s32 %s10, 1
    %s18 = ssub.s32 %s10, %s17
    %p19 = scmp.eq.s32.totalorder %s18, 0
    %s21 = sadd.s32 %s20, 1
    %s22 = scalar_select %p19, %s20, %s21
    %p25 = pneg %p19
    %p26 = scmp.eq.s32.totalorder %s10, 3
    %p27 = por %p25, %p26
    %p28 = scmp.ne.s32.totalorder %s20, %s23
    %p29 = scmp.eq.s32.totalorder %s10, 0
    %p30 = por %p28, %p29
    %p31 = scmp.ne.s32.totalorder %s20, %s23
    %p32 = scmp.eq.s32.totalorder %s15, 3
    %p33 = por %p31, %p32
    %p34 = scmp.ne.s32.totalorder %s23, %s24
    %p35 = scmp.eq.s32.totalorder %s15, 0
    %p36 = por %p34, %p35
    %p37 = scmp.ne.s32.totalorder %s23, %s24
    %p38 = scmp.eq.s32.totalorder %s16, 3
    %p39 = por %p37, %p38
    %p41 = scmp.ne.s32.totalorder %s24, %s40
    %p42 = scmp.eq.s32.totalorder %s16, 0
    %p43 = por %p41, %p42
    %s45 = sadd.s32 %s44, 1
    %p48 = scmp.eq.s32.totalorder %s10, 3
    %p49 = scmp.ne.s32.totalorder %s44, %s46
    %p50 = scmp.eq.s32.totalorder %s10, 0
    %p51 = por %p49, %p50
    %p52 = scmp.ne.s32.totalorder %s44, %s46
    %p53 = scmp.eq.s32.totalorder %s15, 3
    %p54 = por %p52, %p53
    %p55 = scmp.ne.s32.totalorder %s46, %s47
    %p56 = scmp.eq.s32.totalorder %s15, 0
    %p57 = por %p55, %p56
    %p58 = scmp.ne.s32.totalorder %s46, %s47
    %p59 = scmp.eq.s32.totalorder %s16, 3
    %p60 = por %p58, %p59
    %p62 = scmp.ne.s32.totalorder %s47, %s61
    %p63 = scmp.eq.s32.totalorder %s16, 0
    %p64 = por %p62, %p63
    %s66 = sadd.s32 %s65, 1
    %p69 = scmp.eq.s32.totalorder %s10, 3
    %p70 = scmp.ne.s32.totalorder %s65, %s67
    %p71 = scmp.eq.s32.totalorder %s10, 0
    %p72 = por %p70, %p71
    %p73 = scmp.ne.s32.totalorder %s65, %s67
    %p74 = scmp.eq.s32.totalorder %s15, 3
    %p75 = por %p73, %p74
    %p76 = scmp.ne.s32.totalorder %s67, %s68
    %p77 = scmp.eq.s32.totalorder %s15, 0
    %p78 = por %p76, %p77
    %p79 = scmp.ne.s32.totalorder %s67, %s68
    %p80 = scmp.eq.s32.totalorder %s16, 3
    %p81 = por %p79, %p80
    %p83 = scmp.ne.s32.totalorder %s68, %s82
    %p84 = scmp.eq.s32.totalorder %s16, 0
    %p85 = por %p83, %p84
    %s86 = ssub.s32 %s10, %s17
    %p87 = scmp.eq.s32.totalorder %s86, 0
    %s89 = sadd.s32 %s88, 1
    %s90 = scalar_select %p87, %s88, %s89
    %p93 = pneg %p87
    %p94 = scmp.eq.s32.totalorder %s10, 3
    %p95 = por %p93, %p94
    %p96 = scmp.ne.s32.totalorder %s88, %s91
    %p97 = scmp.eq.s32.totalorder %s10, 0
    %p98 = por %p96, %p97
    %p99 = scmp.ne.s32.totalorder %s88, %s91
    %p100 = scmp.eq.s32.totalorder %s15, 3
    %p101 = por %p99, %p100
    %p102 = scmp.ne.s32.totalorder %s91, %s92
    %p103 = scmp.eq.s32.totalorder %s15, 0
    %p104 = por %p102, %p103
    %p105 = scmp.ne.s32.totalorder %s91, %s92
    %p106 = scmp.eq.s32.totalorder %s16, 3
    %p107 = por %p105, %p106
    %p109 = scmp.ne.s32.totalorder %s92, %s108
    %p110 = scmp.eq.s32.totalorder %s16, 0
    %p111 = por %p109, %p110
    %s112 = ssub.s32 %s10, %s17
    %p113 = scmp.eq.s32.totalorder %s112, 0
    %s115 = sadd.s32 %s114, 1
    %s116 = scalar_select %p113, %s114, %s115
    %p119 = pneg %p113
    %p120 = scmp.eq.s32.totalorder %s10, 3
    %p121 = por %p119, %p120
    %p122 = scmp.ne.s32.totalorder %s114, %s117
    %p123 = scmp.eq.s32.totalorder %s10, 0
    %p124 = por %p122, %p123
    %p125 = scmp.ne.s32.totalorder %s114, %s117
    %p126 = scmp.eq.s32.totalorder %s15, 3
    %p127 = por %p125, %p126
    %p128 = scmp.ne.s32.totalorder %s117, %s118
    %p129 = scmp.eq.s32.totalorder %s15, 0
    %p130 = por %p128, %p129
    %p131 = scmp.ne.s32.totalorder %s117, %s118
    %p132 = scmp.eq.s32.totalorder %s16, 3
    %p133 = por %p131, %p132
    %p135 = scmp.ne.s32.totalorder %s118, %s134
    %p136 = scmp.eq.s32.totalorder %s16, 0
    %p137 = por %p135, %p136
    %p138 = scmp.le.s32.totalorder 1, %s10
    %p139 = scmp.lt.s32.totalorder %s10, 5
    %p140 = pnand %p138, %p139
    %p141 = pneg %p140
    // Predicated region
    $region9: #{gaussian_nn_forward.1} parent=5 // pred_check
      _
    $region10: #{gaussian_nn_forward.1} parent=5 // pred_check_branch
      %143 = sbr.rel (%p140) target = $region12
    $region11: #{gaussian_nn_forward.1} parent=5 // pred_region
      %s144 = ssub.s32 %s10, 1
      // Predicated region
      $region13: #{gaussian_nn_forward.1} parent=11 // pred_check
        %p145 = pneg %p57
      $region14: #{gaussian_nn_forward.1} parent=11 // pred_check_branch
        %147 = sbr.rel (%p145) target = $region16
      $region15: #{gaussian_nn_forward.1} parent=11 // pred_region
        _
      $region16: #{gaussian_nn_forward.1} parent=11 // pred_fallthru
        _
      // Predicated region
      $region17: #{gaussian_nn_forward.1} parent=11 // pred_check
        %p148 = pneg %p78
      $region18: #{gaussian_nn_forward.1} parent=11 // pred_check_branch
        %150 = sbr.rel (%p148) target = $region20
      $region19: #{gaussian_nn_forward.1} parent=11 // pred_region
        _
      $region20: #{gaussian_nn_forward.1} parent=11 // pred_fallthru
        _
    $region12: #{gaussian_nn_forward.1} parent=5 // pred_fallthru
      _
    %p151 = scmp.lt.s32.totalorder %s10, 4
    // Predicated region
    $region21: #{gaussian_nn_forward.1} parent=5 // pred_check
      %p152 = pneg %p151
    $region22: #{gaussian_nn_forward.1} parent=5 // pred_check_branch
      %154 = sbr.rel (%p152) target = $region24
    $region23: #{gaussian_nn_forward.1} parent=5 // pred_region
      // Predicated region
      $region25: #{gaussian_nn_forward.1} parent=23 // pred_check
        %p155 = pneg %p30
      $region26: #{gaussian_nn_forward.1} parent=23 // pred_check_branch
        %157 = sbr.rel (%p155) target = $region28
      $region27: #{gaussian_nn_forward.1} parent=23 // pred_region
        %s158 = smul.u32 8, %s10
        %p159 = scmp.lt.s32.totalorder %s158, 31
        %s160 = scalar_select %p159, %s158, 31
        %s161 = smul.addr %s160, 8
        %s162 = scalar_lea.vmem %s0, %s161
        %s163 = smul.u32 8, %s10
      $region28: #{gaussian_nn_forward.1} parent=23 // pred_fallthru
        _
      // Predicated region
      $region29: #{gaussian_nn_forward.1} parent=23 // pred_check
        %p164 = pneg %p98
      $region30: #{gaussian_nn_forward.1} parent=23 // pred_check_branch
        %166 = sbr.rel (%p164) target = $region32
      $region31: #{gaussian_nn_forward.1} parent=23 // pred_region
        %s167 = smul.u32 8, %s10
        %p168 = scmp.lt.s32.totalorder %s167, 31
        %s169 = scalar_select %p168, %s167, 31
        %s170 = smul.addr %s169, 8
        %s171 = scalar_lea.vmem %s3, %s170
        %s172 = smul.u32 8, %s10
      $region32: #{gaussian_nn_forward.1} parent=23 // pred_fallthru
        _
    $region24: #{gaussian_nn_forward.1} parent=5 // pred_fallthru
      _
    %p173 = scmp.le.s32.totalorder 1, %s10
    %p174 = scmp.lt.s32.totalorder %s10, 5
    %p175 = pnand %p173, %p174
    %p176 = pneg %p175
    // Predicated region
    $region33: #{gaussian_nn_forward.1} parent=5 // pred_check
      _
    $region34: #{gaussian_nn_forward.1} parent=5 // pred_check_branch
      %178 = sbr.rel (%p175) target = $region36
    $region35: #{gaussian_nn_forward.1} parent=5 // pred_region
      %s179 = ssub.s32 %s10, 1
      %s180 = smul.u32 8, %s15
      %p181 = scmp.lt.s32.totalorder %s180, 31
      %s182 = scalar_select %p181, %s180, 31
      %s183 = smul.addr %s182, 8
      %s184 = scalar_lea.vmem %s0, %s183
      %p185 = pneg %p36
      %p186 = pneg %p33
      %p187 = pneg %p57
      %p188 = pneg %p54
      %p189 = pneg %p78
      %p190 = pneg %p75
      %s191 = smul.u32 8, %s15
      %p192 = scmp.lt.s32.totalorder %s191, 31
      %s193 = scalar_select %p192, %s191, 31
      %s194 = smul.addr %s193, 8
      %s195 = scalar_lea.vmem %s3, %s194
      %p196 = pneg %p104
      %p197 = pneg %p101
      %p198 = pneg %p130
      %p199 = pneg %p127
      %s200 = smul.u32 8, %s15
      %p201 = scmp.lt.s32.totalorder %s200, 31
      %s202 = scalar_select %p201, %s200, 31
      %s203 = smul.addr %s202, 3
      %s204 = smul.addr %s203, 8
      %s205 = scalar_lea.vmem %s4, %s204
      %s206 = smul.u32 8, %s15
      %p207 = scmp.lt.s32.totalorder %s206, 31
      %s208 = scalar_select %p207, %s206, 31
      %s209 = smul.addr %s208, 8
      %s210 = scalar_lea.vmem %s0, %s209
      %s211 = smul.u32 8, %s15
      %s212 = smul.u32 8, %s15
      %p213 = scmp.lt.s32.totalorder %s212, 31
      %s214 = scalar_select %p213, %s212, 31
      %s215 = smul.addr %s214, 8
      %s216 = scalar_lea.vmem %s3, %s215
      %s217 = smul.u32 8, %s15
      %s218 = smul.u32 8, %s15
      %p219 = scmp.lt.s32.totalorder %s218, 31
      %s220 = scalar_select %p219, %s218, 31
      %s221 = smul.addr %s220, 3
      %s222 = smul.addr %s221, 8
      %s223 = scalar_lea.vmem %s4, %s222
      %s224 = smul.u32 8, %s15
      %v225 = vld [vmem:[%s210] sm:$0xff]
      %v226 = vld [vmem:[%s210 + $0x8] sm:$0xff]
      %v227 = vld [vmem:[%s210 + $0x10] sm:$0xff]
      %v228 = vld [vmem:[%s210 + $0x18] sm:$0xff]
      %v229 = vld [vmem:[%s210 + $0x20] sm:$0xff]
      %v230 = vld [vmem:[%s210 + $0x28] sm:$0xff]
      %v231 = vld [vmem:[%s210 + $0x30] sm:$0xff]
      %v232 = vld [vmem:[%s210 + $0x38] sm:$0xff]
      %v233 = vld [vmem:[%s1] sm:$0xff]
      %v234 = vld [vmem:[%s1 + $0x8] sm:$0xff]
      %v235 = vld [vmem:[%s1 + $0x10] sm:$0xff]
      %v236 = vld [vmem:[%s1 + $0x18] sm:$0xff]
      %v237 = vld [vmem:[%s1 + $0x20] sm:$0xff]
      %v238 = vld [vmem:[%s1 + $0x28] sm:$0xff]
      %v239 = vld [vmem:[%s1 + $0x30] sm:$0xff]
      %v240 = vld [vmem:[%s1 + $0x38] sm:$0xff]
      %v241 = vld [vmem:[%s2] sm:$0x3]
      %v243 = vlaneseq
      %v244 = vshrl.u32 %v243, 7
      %v245 = vsub.s32 0, %v244
      %v246 = vrot.slane %v241, %v245
      %v247 = vlaneseq
      %v248 = vshrl.u32 %v247, 7
      %v249 = vsub.s32 1, %v248
      %v250 = vrot.slane %v241, %v249
      %vm253 = vcmask 261120
      %v255 = vsel %vm253, %v225, 0
      %v258 = vsel %vm253, %v226, 0
      %v261 = vsel %vm253, %v227, 0
      %v264 = vsel %vm253, %v228, 0
      %v267 = vsel %vm253, %v229, 0
      %v270 = vsel %vm253, %v230, 0
      %v273 = vsel %vm253, %v231, 0
      %v276 = vsel %vm253, %v232, 0
      %278 = vmatprep.subr.mxu0 0.0
      %279 = vmatpush1.msra.mxu0 0.0
      %280 = vmatprep.subr.mxu0 0.0
      %281 = vmatpush1.msra.mxu0 0.0
      %282 = vmatprep.subr.mxu0 0.0
      %283 = vmatpush1.msra.mxu0 0.0
      %284 = vmatprep.subr.mxu0 0.0
      %285 = vmatpush1.msra.mxu0 0.0
      %286 = vmatprep.subr.mxu0 0.0
      %287 = vmatpush1.msra.mxu0 0.0
      %288 = vmatprep.subr.mxu0 0.0
      %289 = vmatpush1.msra.mxu0 0.0
      %290 = vmatprep.subr.mxu0 0.0
      %291 = vmatpush1.msra.mxu0 0.0
      %292 = vmatprep.subr.mxu0 0.0
      %293 = vmatpush1.msra.mxu0 0.0
      %294 = vmatprep.subr.mxu0 0.0
      %295 = vmatpush1.msra.mxu0 0.0
      %296 = vmatprep.subr.mxu0 0.0
      %297 = vmatpush1.msra.mxu0 0.0
      %298 = vmatprep.subr.mxu0 0.0
      %299 = vmatpush1.msra.mxu0 0.0
      %300 = vmatprep.subr.mxu0 0.0
      %301 = vmatpush1.msra.mxu0 0.0
      %302 = vmatprep.subr.mxu0 %v240
      %303 = vmatpush1.msra.mxu0 %v239
      %304 = vmatprep.subr.mxu0 %v238
      %305 = vmatpush1.msra.mxu0 %v237
      %306 = vmatprep.subr.mxu0 %v236
      %307 = vmatpush1.msra.mxu0 %v235
      %308 = vmatprep.subr.mxu0 %v234
      %309 = vmatpush1.msra.mxu0 %v233
      %310 = vmatprep.subr.mxu0 0.0
      %311 = vmatpush2.msra.mxu0 0.0
      %312 = vmatprep.subr.mxu0 0.0
      %313 = vmatpush2.msra.mxu0 0.0
      %314 = vmatprep.subr.mxu0 0.0
      %315 = vmatpush2.msra.mxu0 0.0
      %316 = vmatprep.subr.mxu0 0.0
      %317 = vmatpush2.msra.mxu0 0.0
      %318 = vmatprep.subr.mxu0 0.0
      %319 = vmatpush2.msra.mxu0 0.0
      %320 = vmatprep.subr.mxu0 0.0
      %321 = vmatpush2.msra.mxu0 0.0
      %322 = vmatprep.subr.mxu0 0.0
      %323 = vmatpush2.msra.mxu0 0.0
      %324 = vmatprep.subr.mxu0 0.0
      %325 = vmatpush2.msra.mxu0 0.0
      %326 = vmatprep.subr.mxu0 0.0
      %327 = vmatpush2.msra.mxu0 0.0
      %328 = vmatprep.subr.mxu0 0.0
      %329 = vmatpush2.msra.mxu0 0.0
      %330 = vmatprep.subr.mxu0 0.0
      %331 = vmatpush2.msra.mxu0 0.0
      %332 = vmatprep.subr.mxu0 0.0
      %333 = vmatpush2.msra.mxu0 0.0
      %334 = vmatprep.subr.mxu0 0.0
      %335 = vmatpush2.msra.mxu0 0.0
      %336 = vmatprep.subr.mxu0 0.0
      %337 = vmatpush2.msra.mxu0 0.0
      %338 = vmatprep.subr.mxu0 0.0
      %339 = vmatpush2.msra.mxu0 0.0
      %340 = vmatprep.subr.mxu0 0.0
      %341 = vmatpush2.msra.mxu0 0.0
      %342 = vmatprep.mubr.f32.mxu0 0.0
      %343 = vmatmul.mubr.f32.gmra.mxu0 %v255
      %v344 = vpop.f32.mrf.mxu0
      %v345 = vadd.f32 %v246, %v344
      %v346 = vpop.f32.mrf.mxu0
      %v347 = vadd.f32 %v250, %v346
      %348 = vmatprep.mubr.f32.mxu0 0.0
      %349 = vmatmul.mubr.f32.gmra.mxu0 %v258
      %v350 = vpop.f32.mrf.mxu0
      %v351 = vadd.f32 %v246, %v350
      %v352 = vpop.f32.mrf.mxu0
      %v353 = vadd.f32 %v250, %v352
      %354 = vmatprep.mubr.f32.mxu0 0.0
      %355 = vmatmul.mubr.f32.gmra.mxu0 %v261
      %v356 = vpop.f32.mrf.mxu0
      %v357 = vadd.f32 %v246, %v356
      %v358 = vpop.f32.mrf.mxu0
      %v359 = vadd.f32 %v250, %v358
      %360 = vmatprep.mubr.f32.mxu0 0.0
      %361 = vmatmul.mubr.f32.gmra.mxu0 %v264
      %v362 = vpop.f32.mrf.mxu0
      %v363 = vadd.f32 %v246, %v362
      %v364 = vpop.f32.mrf.mxu0
      %v365 = vadd.f32 %v250, %v364
      %366 = vmatprep.mubr.f32.mxu0 0.0
      %367 = vmatmul.mubr.f32.gmra.mxu0 %v267
      %v368 = vpop.f32.mrf.mxu0
      %v369 = vadd.f32 %v246, %v368
      %v370 = vpop.f32.mrf.mxu0
      %v371 = vadd.f32 %v250, %v370
      %372 = vmatprep.mubr.f32.mxu0 0.0
      %373 = vmatmul.mubr.f32.gmra.mxu0 %v270
      %v374 = vpop.f32.mrf.mxu0
      %v375 = vadd.f32 %v246, %v374
      %v376 = vpop.f32.mrf.mxu0
      %v377 = vadd.f32 %v250, %v376
      %378 = vmatprep.mubr.f32.mxu0 0.0
      %379 = vmatmul.mubr.f32.gmra.mxu0 %v273
      %v380 = vpop.f32.mrf.mxu0
      %v381 = vadd.f32 %v246, %v380
      %v382 = vpop.f32.mrf.mxu0
      %v383 = vadd.f32 %v250, %v382
      %384 = vmatprep.mubr.f32.mxu0 0.0
      %385 = vmatmul.mubr.f32.gmra.mxu0 %v276
      %v386 = vpop.f32.mrf.mxu0
      %v387 = vadd.f32 %v246, %v386
      %v388 = vpop.f32.mrf.mxu0
      %v389 = vadd.f32 %v250, %v388
      %390 = vdwg.mxu0
      %v391 = vmax.f32 %v347, 0.0
      %v392 = vmax.f32 %v353, 0.0
      %v393 = vmax.f32 %v359, 0.0
      %v394 = vmax.f32 %v365, 0.0
      %v395 = vmax.f32 %v371, 0.0
      %v396 = vmax.f32 %v377, 0.0
      %v397 = vmax.f32 %v383, 0.0
      %v398 = vmax.f32 %v389, 0.0
      %v399 = vand.u32 2147483647, %v347
      %v400 = vand.u32 2147483647, %v353
      %v401 = vand.u32 2147483647, %v359
      %v402 = vand.u32 2147483647, %v365
      %v403 = vand.u32 2147483647, %v371
      %v404 = vand.u32 2147483647, %v377
      %v405 = vand.u32 2147483647, %v383
      %v406 = vand.u32 2147483647, %v389
      %v407 = vsub.f32 0.0, %v399
      %v408 = vsub.f32 0.0, %v400
      %v409 = vsub.f32 0.0, %v401
      %v410 = vsub.f32 0.0, %v402
      %v411 = vsub.f32 0.0, %v403
      %v412 = vsub.f32 0.0, %v404
      %v413 = vsub.f32 0.0, %v405
      %v414 = vsub.f32 0.0, %v406
      %v415 = vmul.f32 %v407, 1.442695
      %v416 = vpow.pop %v415
      %v417 = vmul.f32 %v408, 1.442695
      %v418 = vpow.pop %v417
      %v419 = vmul.f32 %v409, 1.442695
      %v420 = vpow.pop %v419
      %v421 = vmul.f32 %v410, 1.442695
      %v422 = vpow.pop %v421
      %v423 = vmul.f32 %v411, 1.442695
      %v424 = vpow.pop %v423
      %v425 = vmul.f32 %v412, 1.442695
      %v426 = vpow.pop %v425
      %v427 = vmul.f32 %v413, 1.442695
      %v428 = vpow.pop %v427
      %v429 = vmul.f32 %v414, 1.442695
      %v430 = vpow.pop %v429
      %v431 = vadd.f32 %v416, 1.0
      %v432 = vlog2.pop %v431
      %v433 = vmul.f32 %v432, 0.6931472
      %v434 = vmul.f32 -0.5, %v416
      %v435 = vadd.f32 %v434, 1.0
      %v436 = vmul.f32 %v435, %v416
      %v437 = vand.u32 2147483647, %v416
      %vm438 = vcmp.lt.f32.partialorder %v437, 0.0004427343
      %v439 = vsel %vm438, %v436, %v433
      %v440 = vadd.f32 %v418, 1.0
      %v441 = vlog2.pop %v440
      %v442 = vmul.f32 %v441, 0.6931472
      %v443 = vmul.f32 -0.5, %v418
      %v444 = vadd.f32 %v443, 1.0
      %v445 = vmul.f32 %v444, %v418
      %v446 = vand.u32 2147483647, %v418
      %vm447 = vcmp.lt.f32.partialorder %v446, 0.0004427343
      %v448 = vsel %vm447, %v445, %v442
      %v449 = vadd.f32 %v420, 1.0
      %v450 = vlog2.pop %v449
      %v451 = vmul.f32 %v450, 0.6931472
      %v452 = vmul.f32 -0.5, %v420
      %v453 = vadd.f32 %v452, 1.0
      %v454 = vmul.f32 %v453, %v420
      %v455 = vand.u32 2147483647, %v420
      %vm456 = vcmp.lt.f32.partialorder %v455, 0.0004427343
      %v457 = vsel %vm456, %v454, %v451
      %v458 = vadd.f32 %v422, 1.0
      %v459 = vlog2.pop %v458
      %v460 = vmul.f32 %v459, 0.6931472
      %v461 = vmul.f32 -0.5, %v422
      %v462 = vadd.f32 %v461, 1.0
      %v463 = vmul.f32 %v462, %v422
      %v464 = vand.u32 2147483647, %v422
      %vm465 = vcmp.lt.f32.partialorder %v464, 0.0004427343
      %v466 = vsel %vm465, %v463, %v460
      %v467 = vadd.f32 %v424, 1.0
      %v468 = vlog2.pop %v467
      %v469 = vmul.f32 %v468, 0.6931472
      %v470 = vmul.f32 -0.5, %v424
      %v471 = vadd.f32 %v470, 1.0
      %v472 = vmul.f32 %v471, %v424
      %v473 = vand.u32 2147483647, %v424
      %vm474 = vcmp.lt.f32.partialorder %v473, 0.0004427343
      %v475 = vsel %vm474, %v472, %v469
      %v476 = vadd.f32 %v426, 1.0
      %v477 = vlog2.pop %v476
      %v478 = vmul.f32 %v477, 0.6931472
      %v479 = vmul.f32 -0.5, %v426
      %v480 = vadd.f32 %v479, 1.0
      %v481 = vmul.f32 %v480, %v426
      %v482 = vand.u32 2147483647, %v426
      %vm483 = vcmp.lt.f32.partialorder %v482, 0.0004427343
      %v484 = vsel %vm483, %v481, %v478
      %v485 = vadd.f32 %v428, 1.0
      %v486 = vlog2.pop %v485
      %v487 = vmul.f32 %v486, 0.6931472
      %v488 = vmul.f32 -0.5, %v428
      %v489 = vadd.f32 %v488, 1.0
      %v490 = vmul.f32 %v489, %v428
      %v491 = vand.u32 2147483647, %v428
      %vm492 = vcmp.lt.f32.partialorder %v491, 0.0004427343
      %v493 = vsel %vm492, %v490, %v487
      %v494 = vadd.f32 %v430, 1.0
      %v495 = vlog2.pop %v494
      %v496 = vmul.f32 %v495, 0.6931472
      %v497 = vmul.f32 -0.5, %v430
      %v498 = vadd.f32 %v497, 1.0
      %v499 = vmul.f32 %v498, %v430
      %v500 = vand.u32 2147483647, %v430
      %vm501 = vcmp.lt.f32.partialorder %v500, 0.0004427343
      %v502 = vsel %vm501, %v499, %v496
      %v503 = vadd.f32 %v391, %v439
      %v504 = vadd.f32 %v392, %v448
      %v505 = vadd.f32 %v393, %v457
      %v506 = vadd.f32 %v394, %v466
      %v507 = vadd.f32 %v395, %v475
      %v508 = vadd.f32 %v396, %v484
      %v509 = vadd.f32 %v397, %v493
      %v510 = vadd.f32 %v398, %v502
      %v511 = vld [vmem:[%s216] sm:$0xff]
      %v512 = vld [vmem:[%s216 + $0x8] sm:$0xff]
      %v513 = vld [vmem:[%s216 + $0x10] sm:$0xff]
      %v514 = vld [vmem:[%s216 + $0x18] sm:$0xff]
      %v515 = vld [vmem:[%s216 + $0x20] sm:$0xff]
      %v516 = vld [vmem:[%s216 + $0x28] sm:$0xff]
      %v517 = vld [vmem:[%s216 + $0x30] sm:$0xff]
      %v518 = vld [vmem:[%s216 + $0x38] sm:$0xff]
      %v519 = vmul.f32 %v503, %v511
      %v520 = vmul.f32 %v504, %v512
      %v521 = vmul.f32 %v505, %v513
      %v522 = vmul.f32 %v506, %v514
      %v523 = vmul.f32 %v507, %v515
      %v524 = vmul.f32 %v508, %v516
      %v525 = vmul.f32 %v509, %v517
      %v526 = vmul.f32 %v510, %v518
      %v527 = vadd.f32 %v345, %v519
      %v528 = vadd.f32 %v351, %v520
      %v529 = vadd.f32 %v357, %v521
      %v530 = vadd.f32 %v363, %v522
      %v531 = vadd.f32 %v369, %v523
      %v532 = vadd.f32 %v375, %v524
      %v533 = vadd.f32 %v381, %v525
      %v534 = vadd.f32 %v387, %v526
      %535 = vst [vmem:[%s223] sm:$0xff] %v345
      %536 = vst [vmem:[%s223 + $0x8] sm:$0xff] %v503
      %537 = vst [vmem:[%s223 + $0x10] sm:$0xff] %v527
      %538 = vst [vmem:[%s223 + $0x18] sm:$0xff] %v351
      %539 = vst [vmem:[%s223 + $0x20] sm:$0xff] %v504
      %540 = vst [vmem:[%s223 + $0x28] sm:$0xff] %v528
      %541 = vst [vmem:[%s223 + $0x30] sm:$0xff] %v357
      %542 = vst [vmem:[%s223 + $0x38] sm:$0xff] %v505
      %543 = vst [vmem:[%s223 + $0x40] sm:$0xff] %v529
      %544 = vst [vmem:[%s223 + $0x48] sm:$0xff] %v363
      %545 = vst [vmem:[%s223 + $0x50] sm:$0xff] %v506
      %546 = vst [vmem:[%s223 + $0x58] sm:$0xff] %v530
      %547 = vst [vmem:[%s223 + $0x60] sm:$0xff] %v369
      %548 = vst [vmem:[%s223 + $0x68] sm:$0xff] %v507
      %549 = vst [vmem:[%s223 + $0x70] sm:$0xff] %v531
      %550 = vst [vmem:[%s223 + $0x78] sm:$0xff] %v375
      %551 = vst [vmem:[%s223 + $0x80] sm:$0xff] %v508
      %552 = vst [vmem:[%s223 + $0x88] sm:$0xff] %v532
      %553 = vst [vmem:[%s223 + $0x90] sm:$0xff] %v381
      %554 = vst [vmem:[%s223 + $0x98] sm:$0xff] %v509
      %555 = vst [vmem:[%s223 + $0xa0] sm:$0xff] %v533
      %556 = vst [vmem:[%s223 + $0xa8] sm:$0xff] %v387
      %557 = vst [vmem:[%s223 + $0xb0] sm:$0xff] %v510
      %558 = vst [vmem:[%s223 + $0xb8] sm:$0xff] %v534
      %s559 = smul.u32 8, %s15
      %p560 = scmp.lt.s32.totalorder %s559, 31
      %s561 = scalar_select %p560, %s559, 31
      %s562 = smul.addr %s561, 3
      %s563 = smul.addr %s562, 8
      %s564 = scalar_lea.vmem %s4, %s563
      // Predicated region
      $region37: #{gaussian_nn_forward.1} parent=35 // pred_check
        %p565 = pneg %p127
      $region38: #{gaussian_nn_forward.1} parent=35 // pred_check_branch
        %567 = sbr.rel (%p565) target = $region40
      $region39: #{gaussian_nn_forward.1} parent=35 // pred_region
        %s568 = smul.u32 8, %s15
      $region40: #{gaussian_nn_forward.1} parent=35 // pred_fallthru
        _
    $region36: #{gaussian_nn_forward.1} parent=5 // pred_fallthru
      _
    %p569 = scmp.le.s32.totalorder 2, %s10
    // Predicated region
    $region41: #{gaussian_nn_forward.1} parent=5 // pred_check
      %p570 = pneg %p569
    $region42: #{gaussian_nn_forward.1} parent=5 // pred_check_branch
      %572 = sbr.rel (%p570) target = $region44
    $region43: #{gaussian_nn_forward.1} parent=5 // pred_region
      %s573 = ssub.s32 %s10, 2
      // Predicated region
      $region45: #{gaussian_nn_forward.1} parent=43 // pred_check
        %p574 = pneg %p133
      $region46: #{gaussian_nn_forward.1} parent=43 // pred_check_branch
        %576 = sbr.rel (%p574) target = $region48
      $region47: #{gaussian_nn_forward.1} parent=43 // pred_region
        %s577 = smul.u32 8, %s16
        %p578 = scmp.lt.s32.totalorder %s577, 31
        %s579 = scalar_select %p578, %s577, 31
        %s580 = smul.addr %s579, 3
        %s581 = smul.addr %s580, 8
        %s582 = scalar_lea.vmem %s4, %s581
      $region48: #{gaussian_nn_forward.1} parent=43 // pred_fallthru
        _
    $region44: #{gaussian_nn_forward.1} parent=5 // pred_fallthru
      _
  $region6: #{gaussian_nn_forward.1} parent=0 // loop_footer
    %s14 = sadd.s32 1, %s10
  $region7: #{gaussian_nn_forward.1} parent=0 // loop_footer_branch
    %9 = sbr.rel target = $region3
  $region8: #{gaussian_nn_forward.1} parent=0 // loop_exit
    _

</llo_original>
